<compile_context>
chip_gen: v6e
topology: v6e:2x2x1
jax: 0.10.0
libtpu: 0.0.40
codegen_flags: <defaults>
</compile_context>

<pallas_src>
import jax
import jax.numpy as jnp
from jax.experimental import pallas as pl
from jax.experimental.pallas import tpu as pltpu


def _round_up(x, m):
    return ((x + m - 1) // m) * m


def _conv1x1_kernel(x_ref, w_ref, b_ref, o_ref):
    # x_ref: (TM, Cin), w_ref: (Cin, Cout_p), b_ref: (1, Cout_p), o_ref: (TM, Cout_p)
    acc = jnp.dot(x_ref[...], w_ref[...], preferred_element_type=jnp.float32)
    o_ref[...] = (acc + b_ref[...].astype(jnp.float32)).astype(o_ref.dtype)


def _pick_tile_m(m_rows, cin, cout_p, in_bytes, out_bytes, vmem_budget_bytes):
    """Pick a bandwidth-efficient row tile: multiple of 8, VMEM-bounded,
    512-2048 row target, and >=2 grid steps when there is enough work."""
    m_pad8 = _round_up(m_rows, 8)
    # Double-buffered input + output tiles, plus resident weight/bias (x2 slack).
    per_row = 2 * (cin * in_bytes + cout_p * out_bytes)
    fixed = 2 * (cin * cout_p * in_bytes + cout_p * 4)
    avail = max(vmem_budget_bytes - fixed, 8 * per_row)
    tile = min(2048, avail // per_row)
    tile = max(8, (tile // 8) * 8)
    if m_pad8 <= tile:
        if m_pad8 >= 1024:
            # Split in two so v7x's second TensorCore is not idle while
            # keeping each tile in the bandwidth-efficient (>=512 row) range.
            tile = _round_up((m_pad8 + 1) // 2, 8)
        else:
            tile = m_pad8
    return tile


def conv_emb_forward(x, weight, bias, *, tile_m=None, compute_dtype=None,
                     out_dtype=None, vmem_budget_bytes=20 * 1024 * 1024):
    """x: (B, T, Cin); weight: (Cout, Cin, 1); bias: (Cout,) -> (B, T, Cout)."""
    B, T, Cin = x.shape
    Cout = weight.shape[0]
    M = B * T

    if compute_dtype is None:
        compute_dtype = x.dtype
    if out_dtype is None:
        out_dtype = x.dtype
    in_bytes = jnp.dtype(compute_dtype).itemsize
    out_bytes = jnp.dtype(out_dtype).itemsize

    # Lane-dense output: pad Cout to a multiple of 128 (zero columns live only
    # in the tiny weight/bias) so output stores are unmasked full-lane vst.
    Cout_p = _round_up(Cout, 128)

    if tile_m is None:
        tile_m = _pick_tile_m(M, Cin, Cout_p, in_bytes, out_bytes,
                              vmem_budget_bytes)
    else:
        tile_m = max(8, (int(tile_m) // 8) * 8)
        tile_m = min(tile_m, _round_up(M, 8))
    M_pad = _round_up(M, tile_m)
    grid = (M_pad // tile_m,)

    x2d = x.reshape(M, Cin).astype(compute_dtype)
    if M_pad != M:
        x2d = jnp.pad(x2d, ((0, M_pad - M), (0, 0)))

    w_t = jnp.transpose(weight[:, :, 0], (1, 0)).astype(compute_dtype)  # (Cin, Cout)
    b2d = bias.reshape(1, Cout).astype(jnp.float32)
    if Cout_p != Cout:
        w_t = jnp.pad(w_t, ((0, 0), (0, Cout_p - Cout)))
        b2d = jnp.pad(b2d, ((0, 0), (0, Cout_p - Cout)))

    cost = pl.CostEstimate(
        flops=2 * M * Cin * Cout,
        transcendentals=0,
        bytes_accessed=(M * Cin * in_bytes + M * Cout * out_bytes
                        + Cin * Cout * in_bytes + Cout * 4),
    )

    out2d = pl.pallas_call(
        _conv1x1_kernel,
        out_shape=jax.ShapeDtypeStruct((M_pad, Cout_p), out_dtype),
        grid_spec=pltpu.PrefetchScalarGridSpec(
            num_scalar_prefetch=0,
            grid=grid,
            in_specs=[
                pl.BlockSpec((tile_m, Cin), lambda i: (i, 0)),
                # Constant block index: weight/bias stay VMEM-resident,
                # no re-DMA per row tile.
                pl.BlockSpec((Cin, Cout_p), lambda i: (0, 0)),
                pl.BlockSpec((1, Cout_p), lambda i: (0, 0)),
            ],
            out_specs=pl.BlockSpec((tile_m, Cout_p), lambda i: (i, 0)),
        ),
        compiler_params=pltpu.CompilerParams(
            dimension_semantics=("parallel",),
            vmem_limit_bytes=32 * 1024 * 1024,
        ),
        cost_estimate=cost,
    )(x2d, w_t, b2d)

    # Dropout: identity in eval mode (inference).
    # TODO(synk): training-mode dropout would need pltpu.prng_random_bits + mask.
    out2d = out2d[:M, :Cout]
    return out2d.reshape(B, T, Cout)


if __name__ == "__main__":
    key = jax.random.PRNGKey(0)
    k_x, k_w, k_b = jax.random.split(key, 3)

    B, T, Cin, Cout = 2, 16, 32, 32
    x = jax.random.normal(k_x, (B, T, Cin), dtype=jnp.float32)
    # Deterministic parameter init (mimics nn.Conv1d kaiming-uniform scale).
    bound = 1.0 / jnp.sqrt(Cin)
    weight = jax.random.uniform(k_w, (Cout, Cin, 1), jnp.float32, -bound, bound)
    bias = jax.random.uniform(k_b, (Cout,), jnp.float32, -bound, bound)

    out = conv_emb_forward(x, weight, bias)
    jax.block_until_ready(out)

    # Reference check in plain JAX (same math: 1x1 conv == matmul + bias).
    ref = jnp.einsum("btc,oc->bto", x, weight[:, :, 0]) + bias
    assert out.shape == (B, T, Cout)
    assert jnp.allclose(out, ref, atol=1e-5, rtol=1e-5)

    # Second check: ragged M (B*T not a multiple of the tile) + multi-step grid
    # exercises the row-padding path and the pipelined multi-tile path.
    B2, T2 = 2, 150
    x2 = jax.random.normal(jax.random.PRNGKey(1), (B2, T2, Cin), jnp.float32)
    out2 = conv_emb_forward(x2, weight, bias, tile_m=128)
    jax.block_until_ready(out2)
    ref2 = jnp.einsum("btc,oc->bto", x2, weight[:, :, 0]) + bias
    assert out2.shape == (B2, T2, Cout)
    assert jnp.allclose(out2, ref2, atol=1e-5, rtol=1e-5)

    print("KERNEL_OK")
</pallas_src>

<mosaic_0001>
module attributes {stable_mosaic.version = 11 : i64} {
  func.func @_conv1x1_kernel(%arg0: i32, %arg1: memref<32x32xf32, #tpu.memory_space<vmem>>, %arg2: memref<32x128xf32, #tpu.memory_space<vmem>>, %arg3: memref<1x128xf32, #tpu.memory_space<vmem>>, %arg4: memref<32x128xf32, #tpu.memory_space<vmem>>) attributes {dimension_semantics = [#tpu.dimension_semantics<parallel>], iteration_bounds = array<i64: 1>, scalar_prefetch = 0 : i64, scratch_operands = 0 : i64, tpu.core_type = #tpu.core_type<tc>, window_params = [{transform_indices = @transform_0, window_bounds = array<i64: 32, 32>}, {pipeline_mode = #tpu.pipeline_mode<synchronous>, transform_indices = @transform_1, window_bounds = array<i64: 32, 128>}, {pipeline_mode = #tpu.pipeline_mode<synchronous>, transform_indices = @transform_2, window_bounds = array<i64: 1, 128>}, {transform_indices = @transform_3, window_bounds = array<i64: 32, 128>}]} {
    %c0 = arith.constant 0 : index
    %c0_0 = arith.constant 0 : index
    %0 = vector.load %arg1[%c0, %c0_0] : memref<32x32xf32, #tpu.memory_space<vmem>>, vector<32x32xf32>
    %c0_1 = arith.constant 0 : index
    %c0_2 = arith.constant 0 : index
    %1 = vector.load %arg2[%c0_1, %c0_2] : memref<32x128xf32, #tpu.memory_space<vmem>>, vector<32x128xf32>
    %cst = arith.constant dense<0.000000e+00> : vector<32x128xf32>
    %2 = tpu.matmul %0, %1, %cst {dimension_numbers = #tpu.dot_dimension_numbers<[1], [0], [0], [1], [0, 0, 1, 1], [], []>} : vector<32x32xf32>, vector<32x128xf32>, vector<32x128xf32> -> vector<32x128xf32>
    %c0_3 = arith.constant 0 : index
    %c0_4 = arith.constant 0 : index
    %3 = vector.load %arg3[%c0_3, %c0_4] : memref<1x128xf32, #tpu.memory_space<vmem>>, vector<1x128xf32>
    %4 = vector.broadcast %3 : vector<1x128xf32> to vector<32x128xf32>
    %5 = arith.addf %2, %4 : vector<32x128xf32>
    %c0_5 = arith.constant 0 : index
    %c0_6 = arith.constant 0 : index
    %6 = vector.load %arg4[%c0_5, %c0_6] : memref<32x128xf32, #tpu.memory_space<vmem>>, vector<32x128xf32>
    tpu.vector_store %arg4[%c0_5, %c0_6], %5 {strides = array<i32>} : memref<32x128xf32, #tpu.memory_space<vmem>>, vector<32x128xf32>,
    return
  }
  func.func @transform_0(%arg0: i32) -> (i32, i32) {
    %c0_i32 = arith.constant 0 : i32
    %c0_i32_0 = arith.constant 0 : i32
    return %arg0, %c0_i32 : i32, i32
  }
  func.func @transform_1(%arg0: i32) -> (i32, i32) {
    %c0_i32 = arith.constant 0 : i32
    %c0_i32_0 = arith.constant 0 : i32
    %c0_i32_1 = arith.constant 0 : i32
    return %c0_i32, %c0_i32_0 : i32, i32
  }
  func.func @transform_2(%arg0: i32) -> (i32, i32) {
    %c0_i32 = arith.constant 0 : i32
    %c0_i32_0 = arith.constant 0 : i32
    %c0_i32_1 = arith.constant 0 : i32
    return %c0_i32, %c0_i32_0 : i32, i32
  }
  func.func @transform_3(%arg0: i32) -> (i32, i32) {
    %c0_i32 = arith.constant 0 : i32
    %c0_i32_0 = arith.constant 0 : i32
    return %arg0, %c0_i32 : i32, i32
  }
}

</mosaic_0001>

<llo_original>
// kernel: tpu_custom_call.1
$region0: #{tpu_custom_call.1}
  #allocation0 [shape = 'u32[]', space=smem, size = 0x4, offset = 0x4, fixed_abs, tag = 'smem constant byte address 0x4 - core index']
  #allocation1 [shape = 'u32[144,128]{1,0:T(1,128)}', space=vmem, size = 0x12000, scoped, tag = 'internal scratch']
  %s0 = inlined_call_operand.hbm [shape: f32[32,32], index: 0, kind: input, shape index: {}]
  %s1 = inlined_call_operand.hbm [shape: f32[32,128], index: 1, kind: input, shape index: {}]
  %s2 = inlined_call_operand.vmem [shape: f32[1,128], index: 2, kind: input, shape index: {}]
  %s3 = inlined_call_operand.hbm [shape: f32[32,128], index: 3, kind: output, shape index: {}]
  %s4 = sld [smem:[#allocation0]]
  $region30: #{tpu_custom_call.1} parent=0
    _
  %s6 = ssub.s32 1, %s4
  %s7 = scalar_select 0, %s6, %s4
  $region1: #{tpu_custom_call.1} parent=0
    #allocation2 [shape = 'u8[16384]{0}', space=vmem, size = 0x4000, scoped, tag = 'input window, operand 0, single buffered']
    #allocation3 [shape = 's32[1]{0}', space=sflag, size = 0x4, scoped, tag = 'scoped memory for tpu_custom_call.1']
    #allocation4 [shape = 's32[1]{0}', space=sflag, size = 0x4, scoped, tag = 'scoped memory for tpu_custom_call.1']
    #allocation5 [shape = 'u8[16384]{0}', space=vmem, size = 0x4000, scoped, tag = 'input window, operand 1, single buffered']
    #allocation6 [shape = 's32[1]{0}', space=sflag, size = 0x4, scoped, tag = 'scoped memory for tpu_custom_call.1']
    #allocation7 [shape = 'u8[16384]{0}', space=vmem, size = 0x4000, scoped, tag = 'output window, operand 0, single buffered']
    %8 = vsyncpa [#allocation3], 0
    %9 = vsyncpa [#allocation6], 0
    %10 = vsyncpa [#allocation4], 0
    // Predicated region
    $region2: #{tpu_custom_call.1} parent=1 // pred_check
      _
    $region3: #{tpu_custom_call.1} parent=1 // pred_check_branch
      %12 = sbr.rel (0) target = $region5
    $region4: #{tpu_custom_call.1} parent=1 // pred_region
      %s14 = ssub.s32 512, 512
      %15 = vsyncadd [#allocation3], %s14
      %s16 = sshll.u32 [#allocation2], 4
      %s17 = int_to_ptr.vmem [resolvable:$true] %s16
      %22 = dma.hbm_to_vmem [thread:$0]  %s0, 512, %s17, [#allocation3], 128, 128, 8
    $region5: #{tpu_custom_call.1} parent=1 // pred_fallthru
      _
    // Predicated region
    $region6: #{tpu_custom_call.1} parent=1 // pred_check
      _
    $region7: #{tpu_custom_call.1} parent=1 // pred_check_branch
      %24 = sbr.rel (0) target = $region9
    $region8: #{tpu_custom_call.1} parent=1 // pred_region
      %s26 = ssub.s32 512, 512
      %27 = vsyncadd [#allocation6], %s26
      %s28 = sshll.u32 [#allocation5], 4
      %s29 = int_to_ptr.vmem [resolvable:$true] %s28
      %34 = dma.hbm_to_vmem [thread:$0]  %s1, 512, %s29, [#allocation6], 128, 128, 8
    $region9: #{tpu_custom_call.1} parent=1 // pred_fallthru
      _
    // Predicated region
    $region10: #{tpu_custom_call.1} parent=1 // pred_check
      _
    $region11: #{tpu_custom_call.1} parent=1 // pred_check_branch
      %36 = sbr.rel (0) target = $region13
    $region12: #{tpu_custom_call.1} parent=1 // pred_region
      _
    $region13: #{tpu_custom_call.1} parent=1 // pred_fallthru
      _
    // Predicated region
    $region14: #{tpu_custom_call.1} parent=1 // pred_check
      _
    $region15: #{tpu_custom_call.1} parent=1 // pred_check_branch
      %38 = sbr.rel (0) target = $region17
    $region16: #{tpu_custom_call.1} parent=1 // pred_region
      %39 = dma.done [#allocation3], 512
    $region17: #{tpu_custom_call.1} parent=1 // pred_fallthru
      _
    // Predicated region
    $region18: #{tpu_custom_call.1} parent=1 // pred_check
      _
    $region19: #{tpu_custom_call.1} parent=1 // pred_check_branch
      %41 = sbr.rel (0) target = $region21
    $region20: #{tpu_custom_call.1} parent=1 // pred_region
      %42 = dma.done [#allocation6], 512
    $region21: #{tpu_custom_call.1} parent=1 // pred_fallthru
      _
    %v43 = vld [vmem:[#allocation2] sm:$0xff]
    %v44 = vld [vmem:[#allocation2 + $0x8] sm:$0xff]
    %v45 = vld [vmem:[#allocation2 + $0x10] sm:$0xff]
    %v46 = vld [vmem:[#allocation2 + $0x18] sm:$0xff]
    %v47 = vld [vmem:[#allocation5] sm:$0xff]
    %v48 = vld [vmem:[#allocation5 + $0x8] sm:$0xff]
    %v49 = vld [vmem:[#allocation5 + $0x10] sm:$0xff]
    %v50 = vld [vmem:[#allocation5 + $0x18] sm:$0xff]
    %v51 = vld [vmem:[%s2] sm:$0x1]
    %v53 = vlaneseq
    %v54 = vshrl.u32 %v53, 7
    %v55 = vsub.s32 0, %v54
    %v56 = vrot.slane %v51, %v55
    %vm58 = vcmask 261120
    %v60 = vsel %vm58, %v43, 0
    %v63 = vsel %vm58, %v44, 0
    %v66 = vsel %vm58, %v45, 0
    %v69 = vsel %vm58, %v46, 0
    %71 = vmatprep.subr.mxu0 0.0
    %72 = vmatpush1.msra.mxu0 0.0
    %73 = vmatprep.subr.mxu0 0.0
    %74 = vmatpush1.msra.mxu0 0.0
    %75 = vmatprep.subr.mxu0 0.0
    %76 = vmatpush1.msra.mxu0 0.0
    %77 = vmatprep.subr.mxu0 0.0
    %78 = vmatpush1.msra.mxu0 0.0
    %79 = vmatprep.subr.mxu0 0.0
    %80 = vmatpush1.msra.mxu0 0.0
    %81 = vmatprep.subr.mxu0 0.0
    %82 = vmatpush1.msra.mxu0 0.0
    %83 = vmatprep.subr.mxu0 0.0
    %84 = vmatpush1.msra.mxu0 0.0
    %85 = vmatprep.subr.mxu0 0.0
    %86 = vmatpush1.msra.mxu0 0.0
    %87 = vmatprep.subr.mxu0 0.0
    %88 = vmatpush1.msra.mxu0 0.0
    %89 = vmatprep.subr.mxu0 0.0
    %90 = vmatpush1.msra.mxu0 0.0
    %91 = vmatprep.subr.mxu0 0.0
    %92 = vmatpush1.msra.mxu0 0.0
    %93 = vmatprep.subr.mxu0 0.0
    %94 = vmatpush1.msra.mxu0 0.0
    %95 = vmatprep.subr.mxu0 0.0
    %96 = vmatpush1.msra.mxu0 %v50
    %97 = vmatprep.subr.mxu0 0.0
    %98 = vmatpush1.msra.mxu0 %v49
    %99 = vmatprep.subr.mxu0 0.0
    %100 = vmatpush1.msra.mxu0 %v48
    %101 = vmatprep.subr.mxu0 0.0
    %102 = vmatpush1.msra.mxu0 %v47
    %103 = vmatprep.subr.mxu0 0.0
    %104 = vmatpush2.msra.mxu0 0.0
    %105 = vmatprep.subr.mxu0 0.0
    %106 = vmatpush2.msra.mxu0 0.0
    %107 = vmatprep.subr.mxu0 0.0
    %108 = vmatpush2.msra.mxu0 0.0
    %109 = vmatprep.subr.mxu0 0.0
    %110 = vmatpush2.msra.mxu0 0.0
    %111 = vmatprep.subr.mxu0 0.0
    %112 = vmatpush2.msra.mxu0 0.0
    %113 = vmatprep.subr.mxu0 0.0
    %114 = vmatpush2.msra.mxu0 0.0
    %115 = vmatprep.subr.mxu0 0.0
    %116 = vmatpush2.msra.mxu0 0.0
    %117 = vmatprep.subr.mxu0 0.0
    %118 = vmatpush2.msra.mxu0 0.0
    %119 = vmatprep.subr.mxu0 0.0
    %120 = vmatpush2.msra.mxu0 0.0
    %121 = vmatprep.subr.mxu0 0.0
    %122 = vmatpush2.msra.mxu0 0.0
    %123 = vmatprep.subr.mxu0 0.0
    %124 = vmatpush2.msra.mxu0 0.0
    %125 = vmatprep.subr.mxu0 0.0
    %126 = vmatpush2.msra.mxu0 0.0
    %127 = vmatprep.subr.mxu0 0.0
    %128 = vmatpush2.msra.mxu0 0.0
    %129 = vmatprep.subr.mxu0 0.0
    %130 = vmatpush2.msra.mxu0 0.0
    %131 = vmatprep.subr.mxu0 0.0
    %132 = vmatpush2.msra.mxu0 0.0
    %133 = vmatprep.subr.mxu0 0.0
    %134 = vmatpush2.msra.mxu0 0.0
    %135 = vmatprep.mubr.f32.mxu0 0.0
    %136 = vmatmul.mubr.f32.gmra.mxu0 %v60
    %v137 = vpop.f32.mrf.mxu0
    %v138 = vadd.f32 %v56, %v137
    %v139 = vpop.f32.mrf.mxu0
    %140 = vmatprep.mubr.f32.mxu0 0.0
    %141 = vmatmul.mubr.f32.gmra.mxu0 %v63
    %v142 = vpop.f32.mrf.mxu0
    %v143 = vadd.f32 %v56, %v142
    %v144 = vpop.f32.mrf.mxu0
    %145 = vmatprep.mubr.f32.mxu0 0.0
    %146 = vmatmul.mubr.f32.gmra.mxu0 %v66
    %v147 = vpop.f32.mrf.mxu0
    %v148 = vadd.f32 %v56, %v147
    %v149 = vpop.f32.mrf.mxu0
    %150 = vmatprep.mubr.f32.mxu0 0.0
    %151 = vmatmul.mubr.f32.gmra.mxu0 %v69
    %v152 = vpop.f32.mrf.mxu0
    %v153 = vadd.f32 %v56, %v152
    %v154 = vpop.f32.mrf.mxu0
    %155 = vdwg.mxu0
    %156 = vst [vmem:[#allocation7] sm:$0xff] %v138
    %157 = vst [vmem:[#allocation7 + $0x8] sm:$0xff] %v143
    %158 = vst [vmem:[#allocation7 + $0x10] sm:$0xff] %v148
    %159 = vst [vmem:[#allocation7 + $0x18] sm:$0xff] %v153
    // Predicated region
    $region22: #{tpu_custom_call.1} parent=1 // pred_check
      _
    $region23: #{tpu_custom_call.1} parent=1 // pred_check_branch
      %161 = sbr.rel (0) target = $region25
    $region24: #{tpu_custom_call.1} parent=1 // pred_region
      %s163 = ssub.s32 512, 512
      %164 = vsyncadd [#allocation4], %s163
      %s165 = sshll.u32 [#allocation7], 4
      %s166 = int_to_ptr.vmem [resolvable:$true] %s165
      %171 = dma.vmem_to_hbm [thread:$0]  %s166, 512, %s3, [#allocation4], 128, 128, 8
    $region25: #{tpu_custom_call.1} parent=1 // pred_fallthru
      _
    // Predicated region
    $region26: #{tpu_custom_call.1} parent=1 // pred_check
      _
    $region27: #{tpu_custom_call.1} parent=1 // pred_check_branch
      %173 = sbr.rel (0) target = $region29
    $region28: #{tpu_custom_call.1} parent=1 // pred_region
      %174 = dma.done [#allocation4], 512
    $region29: #{tpu_custom_call.1} parent=1 // pred_fallthru
      _
    %175 = vsyncpa [#allocation3], 1
    %176 = vsyncpa [#allocation6], 1
    %177 = vsyncpa [#allocation4], 1

</llo_original>
